<compile_context>
chip_gen: v7x
topology: tpu7x:2x2x1
jax: 0.10.0
libtpu: 0.0.40
codegen_flags: <defaults>
</compile_context>

<pallas_src>
import jax
import jax.numpy as jnp
from jax.experimental import pallas as pl
from jax.experimental.pallas import tpu as pltpu

IN_DIM, H1, H2, OUT_DIM = 9, 50, 30, 2


def mlp_kernel(x_ref, w1_ref, b1_ref, w2_ref, b2_ref, w3_ref, b3_ref, o_ref):
    # fl_1 + ReLU  (MXU matmul, f32 accumulate; bias/ReLU in f32 on the VPU)
    h1 = jnp.dot(x_ref[...], w1_ref[...], preferred_element_type=jnp.float32)
    h1 = jnp.maximum(h1 + b1_ref[...], 0.0)
    # flt + ReLU
    h2 = jnp.dot(h1.astype(w2_ref.dtype), w2_ref[...],
                 preferred_element_type=jnp.float32)
    h2 = jnp.maximum(h2 + b2_ref[...], 0.0)
    # fl3 (no activation); store directly as a dense (tb, 2) block
    out = jnp.dot(h2.astype(w3_ref.dtype), w3_ref[...],
                  preferred_element_type=jnp.float32)
    o_ref[...] = (out + b3_ref[...]).astype(o_ref.dtype)


def feedforward_nn(x, w1, b1, w2, b2, w3, b3, *,
                   mxu_dtype=jnp.bfloat16, block_b=4096):
    """Forward pass of FeedforwardNN. x: (B, 9) f32 -> (B, 2) f32."""
    B = x.shape[0]
    itemsize = jnp.dtype(mxu_dtype).itemsize
    sub = 16 if itemsize < 4 else 8  # sublane packing multiple for the MXU dtype

    # Batch tile: if the whole batch fits in one tile, use it exactly (block ==
    # full array dim -> always a legal layout, any B).  Otherwise use a large,
    # sublane-aligned tile; the ragged last tile is masked by Pallas (no jnp.pad).
    if B <= block_b:
        tb = B
    else:
        tb = (block_b // sub) * sub
    grid = (pl.cdiv(B, tb),)

    # MXU operands optionally in bf16 (halves the streamed x HBM traffic);
    # biases stay f32 so the VPU-side math is f32 on every generation.
    xc = x.astype(mxu_dtype)
    w1c = w1.astype(mxu_dtype)
    w2c = w2.astype(mxu_dtype)
    w3c = w3.astype(mxu_dtype)
    b1c = b1.astype(jnp.float32)
    b2c = b2.astype(jnp.float32)
    b3c = b3.astype(jnp.float32)

    flops = 2 * (IN_DIM * H1 + H1 * H2 + H2 * OUT_DIM) * B
    bytes_accessed = (B * IN_DIM * itemsize                       # streamed x
                      + (IN_DIM * H1 + H1 * H2 + H2 * OUT_DIM) * itemsize
                      + (H1 + H2 + OUT_DIM) * 4                   # biases
                      + B * OUT_DIM * 4)                          # output

    resident = lambda shape: pl.BlockSpec(shape, lambda i: (0, 0))

    out = pl.pallas_call(
        mlp_kernel,
        out_shape=jax.ShapeDtypeStruct((B, OUT_DIM), jnp.float32),
        grid=grid,
        in_specs=[
            pl.BlockSpec((tb, IN_DIM), lambda i: (i, 0)),   # streamed x tiles
            resident((IN_DIM, H1)), resident((1, H1)),      # VMEM-resident weights
            resident((H1, H2)), resident((1, H2)),
            resident((H2, OUT_DIM)), resident((1, OUT_DIM)),
        ],
        out_specs=pl.BlockSpec((tb, OUT_DIM), lambda i: (i, 0)),  # dense (B, 2) output
        compiler_params=pltpu.CompilerParams(
            dimension_semantics=("parallel",),               # megacore on v7x
            vmem_limit_bytes=48 * 1024 * 1024),              # > 16/32 MiB scoped default
        cost_estimate=pl.CostEstimate(
            flops=flops, transcendentals=0, bytes_accessed=bytes_accessed),
    )(xc, w1c, b1c, w2c, b2c, w3c, b3c)

    return out


def init_linear(key, fan_in, fan_out):
    # Mimics torch.nn.Linear default init: U(-1/sqrt(fan_in), 1/sqrt(fan_in))
    kw, kb = jax.random.split(key)
    bound = 1.0 / (fan_in ** 0.5)
    w = jax.random.uniform(kw, (fan_in, fan_out), jnp.float32, -bound, bound)
    b = jax.random.uniform(kb, (1, fan_out), jnp.float32, -bound, bound)
    return w, b


if __name__ == "__main__":
    key = jax.random.PRNGKey(0)
    kx, k1, k2, k3 = jax.random.split(key, 4)

    batch = 8
    x = jax.random.normal(kx, (batch, IN_DIM), jnp.float32)

    w1, b1 = init_linear(k1, IN_DIM, H1)
    w2, b2 = init_linear(k2, H1, H2)
    w3, b3 = init_linear(k3, H2, OUT_DIM)

    # Reference in plain JAX (same math as the PyTorch module).
    ref = jnp.maximum(x @ w1 + b1, 0.0)
    ref = jnp.maximum(ref @ w2 + b2, 0.0)
    ref = ref @ w3 + b3

    # Exact f32 path (matches the PyTorch forward numerics).
    out_f32 = jax.block_until_ready(
        feedforward_nn(x, w1, b1, w2, b2, w3, b3, mxu_dtype=jnp.float32))
    assert out_f32.shape == (batch, OUT_DIM)
    assert jnp.allclose(out_f32, ref, atol=1e-5, rtol=1e-5)

    # Default bf16-MXU-operand path (halved streamed HBM traffic); looser tolerance.
    out_bf16 = jax.block_until_ready(
        feedforward_nn(x, w1, b1, w2, b2, w3, b3))
    assert out_bf16.shape == (batch, OUT_DIM)
    assert jnp.allclose(out_bf16, ref, atol=1e-1, rtol=1e-1)

    print("KERNEL_OK")
</pallas_src>

<mosaic_0001>
module attributes {stable_mosaic.version = 11 : i64} {
  func.func @mlp_kernel(%arg0: i32, %arg1: memref<8x9xf32, #tpu.memory_space<vmem>>, %arg2: memref<9x50xf32, #tpu.memory_space<vmem>>, %arg3: memref<1x50xf32, #tpu.memory_space<vmem>>, %arg4: memref<50x30xf32, #tpu.memory_space<vmem>>, %arg5: memref<1x30xf32, #tpu.memory_space<vmem>>, %arg6: memref<30x2xf32, #tpu.memory_space<vmem>>, %arg7: memref<1x2xf32, #tpu.memory_space<vmem>>, %arg8: memref<8x2xf32, #tpu.memory_space<vmem>>) attributes {dimension_semantics = [#tpu.dimension_semantics<parallel>], iteration_bounds = array<i64: 1>, scalar_prefetch = 0 : i64, scratch_operands = 0 : i64, tpu.core_type = #tpu.core_type<tc>, window_params = [{transform_indices = @transform_0, window_bounds = array<i64: 8, 9>}, {pipeline_mode = #tpu.pipeline_mode<synchronous>, transform_indices = @transform_1, window_bounds = array<i64: 9, 50>}, {pipeline_mode = #tpu.pipeline_mode<synchronous>, transform_indices = @transform_2, window_bounds = array<i64: 1, 50>}, {pipeline_mode = #tpu.pipeline_mode<synchronous>, transform_indices = @transform_3, window_bounds = array<i64: 50, 30>}, {pipeline_mode = #tpu.pipeline_mode<synchronous>, transform_indices = @transform_4, window_bounds = array<i64: 1, 30>}, {pipeline_mode = #tpu.pipeline_mode<synchronous>, transform_indices = @transform_5, window_bounds = array<i64: 30, 2>}, {pipeline_mode = #tpu.pipeline_mode<synchronous>, transform_indices = @transform_6, window_bounds = array<i64: 1, 2>}, {transform_indices = @transform_7, window_bounds = array<i64: 8, 2>}]} {
    %c0 = arith.constant 0 : index
    %c0_0 = arith.constant 0 : index
    %0 = vector.load %arg1[%c0, %c0_0] : memref<8x9xf32, #tpu.memory_space<vmem>>, vector<8x9xf32>
    %c0_1 = arith.constant 0 : index
    %c0_2 = arith.constant 0 : index
    %1 = vector.load %arg2[%c0_1, %c0_2] : memref<9x50xf32, #tpu.memory_space<vmem>>, vector<9x50xf32>
    %cst = arith.constant dense<0.000000e+00> : vector<8x50xf32>
    %2 = tpu.matmul %0, %1, %cst {dimension_numbers = #tpu.dot_dimension_numbers<[1], [0], [0], [1], [0, 0, 1, 1], [], []>} : vector<8x9xf32>, vector<9x50xf32>, vector<8x50xf32> -> vector<8x50xf32>
    %c0_3 = arith.constant 0 : index
    %c0_4 = arith.constant 0 : index
    %3 = vector.load %arg3[%c0_3, %c0_4] : memref<1x50xf32, #tpu.memory_space<vmem>>, vector<1x50xf32>
    %4 = vector.broadcast %3 : vector<1x50xf32> to vector<8x50xf32>
    %5 = arith.addf %2, %4 : vector<8x50xf32>
    %cst_5 = arith.constant 0.000000e+00 : f32
    %6 = vector.broadcast %cst_5 : f32 to vector<8x50xf32>
    %7 = arith.maximumf %5, %6 : vector<8x50xf32>
    %c0_6 = arith.constant 0 : index
    %c0_7 = arith.constant 0 : index
    %8 = vector.load %arg4[%c0_6, %c0_7] : memref<50x30xf32, #tpu.memory_space<vmem>>, vector<50x30xf32>
    %cst_8 = arith.constant dense<0.000000e+00> : vector<8x30xf32>
    %9 = tpu.matmul %7, %8, %cst_8 {dimension_numbers = #tpu.dot_dimension_numbers<[1], [0], [0], [1], [0, 0, 1, 1], [], []>} : vector<8x50xf32>, vector<50x30xf32>, vector<8x30xf32> -> vector<8x30xf32>
    %c0_9 = arith.constant 0 : index
    %c0_10 = arith.constant 0 : index
    %10 = vector.load %arg5[%c0_9, %c0_10] : memref<1x30xf32, #tpu.memory_space<vmem>>, vector<1x30xf32>
    %11 = vector.broadcast %10 : vector<1x30xf32> to vector<8x30xf32>
    %12 = arith.addf %9, %11 : vector<8x30xf32>
    %cst_11 = arith.constant 0.000000e+00 : f32
    %13 = vector.broadcast %cst_11 : f32 to vector<8x30xf32>
    %14 = arith.maximumf %12, %13 : vector<8x30xf32>
    %c0_12 = arith.constant 0 : index
    %c0_13 = arith.constant 0 : index
    %15 = vector.load %arg6[%c0_12, %c0_13] : memref<30x2xf32, #tpu.memory_space<vmem>>, vector<30x2xf32>
    %cst_14 = arith.constant dense<0.000000e+00> : vector<8x2xf32>
    %16 = tpu.matmul %14, %15, %cst_14 {dimension_numbers = #tpu.dot_dimension_numbers<[1], [0], [0], [1], [0, 0, 1, 1], [], []>} : vector<8x30xf32>, vector<30x2xf32>, vector<8x2xf32> -> vector<8x2xf32>
    %c0_15 = arith.constant 0 : index
    %c0_16 = arith.constant 0 : index
    %17 = vector.load %arg7[%c0_15, %c0_16] : memref<1x2xf32, #tpu.memory_space<vmem>>, vector<1x2xf32>
    %18 = vector.broadcast %17 : vector<1x2xf32> to vector<8x2xf32>
    %19 = arith.addf %16, %18 : vector<8x2xf32>
    %c0_17 = arith.constant 0 : index
    %c0_18 = arith.constant 0 : index
    %20 = vector.load %arg8[%c0_17, %c0_18] : memref<8x2xf32, #tpu.memory_space<vmem>>, vector<8x2xf32>
    tpu.vector_store %arg8[%c0_17, %c0_18], %19 {strides = array<i32>} : memref<8x2xf32, #tpu.memory_space<vmem>>, vector<8x2xf32>,
    return
  }
  func.func @transform_0(%arg0: i32) -> (i32, i32) {
    %c0_i32 = arith.constant 0 : i32
    %c0_i32_0 = arith.constant 0 : i32
    return %arg0, %c0_i32 : i32, i32
  }
  func.func @transform_1(%arg0: i32) -> (i32, i32) {
    %c0_i32 = arith.constant 0 : i32
    %c0_i32_0 = arith.constant 0 : i32
    %c0_i32_1 = arith.constant 0 : i32
    return %c0_i32, %c0_i32_0 : i32, i32
  }
  func.func @transform_2(%arg0: i32) -> (i32, i32) {
    %c0_i32 = arith.constant 0 : i32
    %c0_i32_0 = arith.constant 0 : i32
    %c0_i32_1 = arith.constant 0 : i32
    return %c0_i32, %c0_i32_0 : i32, i32
  }
  func.func @transform_3(%arg0: i32) -> (i32, i32) {
    %c0_i32 = arith.constant 0 : i32
    %c0_i32_0 = arith.constant 0 : i32
    %c0_i32_1 = arith.constant 0 : i32
    return %c0_i32, %c0_i32_0 : i32, i32
  }
  func.func @transform_4(%arg0: i32) -> (i32, i32) {
    %c0_i32 = arith.constant 0 : i32
    %c0_i32_0 = arith.constant 0 : i32
    %c0_i32_1 = arith.constant 0 : i32
    return %c0_i32, %c0_i32_0 : i32, i32
  }
  func.func @transform_5(%arg0: i32) -> (i32, i32) {
    %c0_i32 = arith.constant 0 : i32
    %c0_i32_0 = arith.constant 0 : i32
    %c0_i32_1 = arith.constant 0 : i32
    return %c0_i32, %c0_i32_0 : i32, i32
  }
  func.func @transform_6(%arg0: i32) -> (i32, i32) {
    %c0_i32 = arith.constant 0 : i32
    %c0_i32_0 = arith.constant 0 : i32
    %c0_i32_1 = arith.constant 0 : i32
    return %c0_i32, %c0_i32_0 : i32, i32
  }
  func.func @transform_7(%arg0: i32) -> (i32, i32) {
    %c0_i32 = arith.constant 0 : i32
    %c0_i32_0 = arith.constant 0 : i32
    return %arg0, %c0_i32 : i32, i32
  }
}

</mosaic_0001>

<llo_original>
// kernel: tpu_custom_call.1
$region0: #{tpu_custom_call.1}
  #allocation0 [shape = 'u32[]', space=smem, size = 0x4, offset = 0x4, fixed_abs, tag = 'smem constant byte address 0x4 - core index']
  #allocation1 [shape = 'u32[144,128]{1,0:T(1,128)}', space=vmem, size = 0x12000, scoped, tag = 'internal scratch']
  %s0 = inlined_call_operand.vmem [shape: f32[8,9], index: 0, kind: input, shape index: {}]
  %s1 = inlined_call_operand.vmem [shape: f32[9,50], index: 1, kind: input, shape index: {}]
  %s2 = inlined_call_operand.vmem [shape: f32[1,50], index: 2, kind: input, shape index: {}]
  %s3 = inlined_call_operand.vmem [shape: f32[50,30], index: 3, kind: input, shape index: {}]
  %s4 = inlined_call_operand.vmem [shape: f32[1,30], index: 4, kind: input, shape index: {}]
  %s5 = inlined_call_operand.vmem [shape: f32[30,2], index: 5, kind: input, shape index: {}]
  %s6 = inlined_call_operand.vmem [shape: f32[1,2], index: 6, kind: input, shape index: {}]
  %s7 = inlined_call_operand.vmem [shape: f32[8,2], index: 7, kind: output, shape index: {}]
  %s8 = sld [smem:[#allocation0]]
  $region38: #{tpu_custom_call.1} parent=0
    _
  %s10 = ssub.s32 1, %s8
  %s11 = scalar_select 0, %s10, %s8
  // Predicated region
  $region2: #{tpu_custom_call.1} parent=0 // pred_check
    _
  $region3: #{tpu_custom_call.1} parent=0 // pred_check_branch
    %13 = sbr.rel (0) target = $region5
  $region4: #{tpu_custom_call.1} parent=0 // pred_region
    _
  $region5: #{tpu_custom_call.1} parent=0 // pred_fallthru
    _
  // Predicated region
  $region6: #{tpu_custom_call.1} parent=0 // pred_check
    _
  $region7: #{tpu_custom_call.1} parent=0 // pred_check_branch
    %15 = sbr.rel (0) target = $region9
  $region8: #{tpu_custom_call.1} parent=0 // pred_region
    _
  $region9: #{tpu_custom_call.1} parent=0 // pred_fallthru
    _
  // Predicated region
  $region10: #{tpu_custom_call.1} parent=0 // pred_check
    _
  $region11: #{tpu_custom_call.1} parent=0 // pred_check_branch
    %17 = sbr.rel (0) target = $region13
  $region12: #{tpu_custom_call.1} parent=0 // pred_region
    _
  $region13: #{tpu_custom_call.1} parent=0 // pred_fallthru
    _
  // Predicated region
  $region14: #{tpu_custom_call.1} parent=0 // pred_check
    _
  $region15: #{tpu_custom_call.1} parent=0 // pred_check_branch
    %19 = sbr.rel (0) target = $region17
  $region16: #{tpu_custom_call.1} parent=0 // pred_region
    _
  $region17: #{tpu_custom_call.1} parent=0 // pred_fallthru
    _
  // Predicated region
  $region18: #{tpu_custom_call.1} parent=0 // pred_check
    _
  $region19: #{tpu_custom_call.1} parent=0 // pred_check_branch
    %21 = sbr.rel (0) target = $region21
  $region20: #{tpu_custom_call.1} parent=0 // pred_region
    _
  $region21: #{tpu_custom_call.1} parent=0 // pred_fallthru
    _
  // Predicated region
  $region22: #{tpu_custom_call.1} parent=0 // pred_check
    _
  $region23: #{tpu_custom_call.1} parent=0 // pred_check_branch
    %23 = sbr.rel (0) target = $region25
  $region24: #{tpu_custom_call.1} parent=0 // pred_region
    _
  $region25: #{tpu_custom_call.1} parent=0 // pred_fallthru
    _
  // Predicated region
  $region26: #{tpu_custom_call.1} parent=0 // pred_check
    _
  $region27: #{tpu_custom_call.1} parent=0 // pred_check_branch
    %25 = sbr.rel (0) target = $region29
  $region28: #{tpu_custom_call.1} parent=0 // pred_region
    _
  $region29: #{tpu_custom_call.1} parent=0 // pred_fallthru
    _
  %v26 = vld [vmem:[%s0] sm:$0xff]
  %v27 = vld [vmem:[%s1] sm:$0xff]
  %v28 = vld [vmem:[%s1 + $0x8] sm:$0x1]
  %v29 = vld [vmem:[%s2] sm:$0x1]
  %v31 = vlaneseq
  %v32 = vshrl.u32 %v31, 7
  %v33 = vsub.s32 0, %v32
  %v34 = vrot.slane %v29, %v33
  %vm36 = vcmask 72704
  %v38 = vsel %vm36, %v26, 0
  %vm40 = vcmask 1040384
  %v42 = vsel %vm40, %v28, 0
  %44 = vmatprep.subr.mxu0 0.0
  %45 = vmatpush1.msra.mxu0 %v27
  %46 = vmatprep.subr.mxu0 0.0
  %47 = vmatpush1.msra.mxu0 %v42
  %48 = vmatprep.subr.mxu0 0.0
  %49 = vmatpush1.msra.mxu0 0.0
  %50 = vmatprep.subr.mxu0 0.0
  %51 = vmatpush1.msra.mxu0 0.0
  %52 = vmatprep.subr.mxu0 0.0
  %53 = vmatpush1.msra.mxu0 0.0
  %54 = vmatprep.subr.mxu0 0.0
  %55 = vmatpush1.msra.mxu0 0.0
  %56 = vmatprep.subr.mxu0 0.0
  %57 = vmatpush1.msra.mxu0 0.0
  %58 = vmatprep.subr.mxu0 0.0
  %59 = vmatpush1.msra.mxu0 0.0
  %60 = vmatprep.subr.mxu0 0.0
  %61 = vmatpush1.msra.mxu0 0.0
  %62 = vmatprep.subr.mxu0 0.0
  %63 = vmatpush1.msra.mxu0 0.0
  %64 = vmatprep.subr.mxu0 0.0
  %65 = vmatpush1.msra.mxu0 0.0
  %66 = vmatprep.subr.mxu0 0.0
  %67 = vmatpush1.msra.mxu0 0.0
  %68 = vmatprep.subr.mxu0 0.0
  %69 = vmatpush1.msra.mxu0 0.0
  %70 = vmatprep.subr.mxu0 0.0
  %71 = vmatpush1.msra.mxu0 0.0
  %72 = vmatprep.subr.mxu0 0.0
  %73 = vmatpush1.msra.mxu0 0.0
  %74 = vmatprep.subr.mxu0 0.0
  %75 = vmatpush1.msra.mxu0 0.0
  %76 = vmatprep.subr.mxu0 0.0
  %77 = vmatpush1.msra.mxu0 0.0
  %78 = vmatprep.subr.mxu0 0.0
  %79 = vmatpush1.msra.mxu0 0.0
  %80 = vmatprep.subr.mxu0 0.0
  %81 = vmatpush1.msra.mxu0 0.0
  %82 = vmatprep.subr.mxu0 0.0
  %83 = vmatpush1.msra.mxu0 0.0
  %84 = vmatprep.subr.mxu0 0.0
  %85 = vmatpush1.msra.mxu0 0.0
  %86 = vmatprep.subr.mxu0 0.0
  %87 = vmatpush1.msra.mxu0 0.0
  %88 = vmatprep.subr.mxu0 0.0
  %89 = vmatpush1.msra.mxu0 0.0
  %90 = vmatprep.subr.mxu0 0.0
  %91 = vmatpush1.msra.mxu0 0.0
  %92 = vmatprep.subr.mxu0 0.0
  %93 = vmatpush1.msra.mxu0 0.0
  %94 = vmatprep.subr.mxu0 0.0
  %95 = vmatpush1.msra.mxu0 0.0
  %96 = vmatprep.subr.mxu0 0.0
  %97 = vmatpush1.msra.mxu0 0.0
  %98 = vmatprep.subr.mxu0 0.0
  %99 = vmatpush1.msra.mxu0 0.0
  %100 = vmatprep.subr.mxu0 0.0
  %101 = vmatpush1.msra.mxu0 0.0
  %102 = vmatprep.subr.mxu0 0.0
  %103 = vmatpush1.msra.mxu0 0.0
  %104 = vmatprep.subr.mxu0 0.0
  %105 = vmatpush1.msra.mxu0 0.0
  %106 = vmatprep.subr.mxu0 0.0
  %107 = vmatpush1.msra.mxu0 0.0
  %108 = vmatprep.mubr.f32.mxu0 0.0
  %109 = vmatmul.mubr.f32.gmra.mrb[0].mxu0 %v38
  %v110 = vpop.f32.mrb[0].mxu0
  %v111 = vadd.f32 %v34, %v110
  %v112 = vpop.f32.mrb[0].mxu0
  %113 = vdwg.mxu0
  %v114 = vmax.f32 %v111, 0.0
  %v115 = vld [vmem:[%s3] sm:$0xff]
  %v116 = vld [vmem:[%s3 + $0x8] sm:$0xff]
  %v117 = vld [vmem:[%s3 + $0x10] sm:$0xff]
  %v118 = vld [vmem:[%s3 + $0x18] sm:$0xff]
  %v119 = vld [vmem:[%s3 + $0x20] sm:$0xff]
  %v120 = vld [vmem:[%s3 + $0x28] sm:$0xff]
  %v121 = vld [vmem:[%s3 + $0x30] sm:$0x3]
  %v122 = vld [vmem:[%s4] sm:$0x1]
  %v124 = vlaneseq
  %v125 = vshrl.u32 %v124, 7
  %v126 = vsub.s32 0, %v125
  %v127 = vrot.slane %v122, %v126
  %vm129 = vcmask 408576
  %v131 = vsel %vm129, %v114, 0
  %vm133 = vcmask 1041408
  %v135 = vsel %vm133, %v121, 0
  %137 = vmatprep.subr.mxu0 0.0
  %138 = vmatpush1.msra.mxu0 %v115
  %139 = vmatprep.subr.mxu0 0.0
  %140 = vmatpush1.msra.mxu0 %v116
  %141 = vmatprep.subr.mxu0 0.0
  %142 = vmatpush1.msra.mxu0 %v117
  %143 = vmatprep.subr.mxu0 0.0
  %144 = vmatpush1.msra.mxu0 %v118
  %145 = vmatprep.subr.mxu0 0.0
  %146 = vmatpush1.msra.mxu0 %v119
  %147 = vmatprep.subr.mxu0 0.0
  %148 = vmatpush1.msra.mxu0 %v120
  %149 = vmatprep.subr.mxu0 0.0
  %150 = vmatpush1.msra.mxu0 %v135
  %151 = vmatprep.subr.mxu0 0.0
  %152 = vmatpush1.msra.mxu0 0.0
  %153 = vmatprep.subr.mxu0 0.0
  %154 = vmatpush1.msra.mxu0 0.0
  %155 = vmatprep.subr.mxu0 0.0
  %156 = vmatpush1.msra.mxu0 0.0
  %157 = vmatprep.subr.mxu0 0.0
  %158 = vmatpush1.msra.mxu0 0.0
  %159 = vmatprep.subr.mxu0 0.0
  %160 = vmatpush1.msra.mxu0 0.0
  %161 = vmatprep.subr.mxu0 0.0
  %162 = vmatpush1.msra.mxu0 0.0
  %163 = vmatprep.subr.mxu0 0.0
  %164 = vmatpush1.msra.mxu0 0.0
  %165 = vmatprep.subr.mxu0 0.0
  %166 = vmatpush1.msra.mxu0 0.0
  %167 = vmatprep.subr.mxu0 0.0
  %168 = vmatpush1.msra.mxu0 0.0
  %169 = vmatprep.subr.mxu0 0.0
  %170 = vmatpush1.msra.mxu0 0.0
  %171 = vmatprep.subr.mxu0 0.0
  %172 = vmatpush1.msra.mxu0 0.0
  %173 = vmatprep.subr.mxu0 0.0
  %174 = vmatpush1.msra.mxu0 0.0
  %175 = vmatprep.subr.mxu0 0.0
  %176 = vmatpush1.msra.mxu0 0.0
  %177 = vmatprep.subr.mxu0 0.0
  %178 = vmatpush1.msra.mxu0 0.0
  %179 = vmatprep.subr.mxu0 0.0
  %180 = vmatpush1.msra.mxu0 0.0
  %181 = vmatprep.subr.mxu0 0.0
  %182 = vmatpush1.msra.mxu0 0.0
  %183 = vmatprep.subr.mxu0 0.0
  %184 = vmatpush1.msra.mxu0 0.0
  %185 = vmatprep.subr.mxu0 0.0
  %186 = vmatpush1.msra.mxu0 0.0
  %187 = vmatprep.subr.mxu0 0.0
  %188 = vmatpush1.msra.mxu0 0.0
  %189 = vmatprep.subr.mxu0 0.0
  %190 = vmatpush1.msra.mxu0 0.0
  %191 = vmatprep.subr.mxu0 0.0
  %192 = vmatpush1.msra.mxu0 0.0
  %193 = vmatprep.subr.mxu0 0.0
  %194 = vmatpush1.msra.mxu0 0.0
  %195 = vmatprep.subr.mxu0 0.0
  %196 = vmatpush1.msra.mxu0 0.0
  %197 = vmatprep.subr.mxu0 0.0
  %198 = vmatpush1.msra.mxu0 0.0
  %199 = vmatprep.subr.mxu0 0.0
  %200 = vmatpush1.msra.mxu0 0.0
  %201 = vmatprep.mubr.f32.mxu0 0.0
  %202 = vmatmul.mubr.f32.gmra.mrb[0].mxu0 %v131
  %v203 = vpop.f32.mrb[0].mxu0
  %v204 = vadd.f32 %v127, %v203
  %v205 = vpop.f32.mrb[0].mxu0
  %206 = vdwg.mxu0
  %v207 = vmax.f32 %v204, 0.0
  %v208 = vld [vmem:[%s5] sm:$0xff]
  %v209 = vld [vmem:[%s5 + $0x8] sm:$0xff]
  %v210 = vld [vmem:[%s5 + $0x10] sm:$0xff]
  %v211 = vld [vmem:[%s5 + $0x18] sm:$0x3f]
  %v212 = vld [vmem:[%s6] sm:$0x1]
  %v214 = vlaneseq
  %v215 = vshrl.u32 %v214, 7
  %v216 = vsub.s32 0, %v215
  %v217 = vrot.slane %v212, %v216
  %vm219 = vcmask 244736
  %v221 = vsel %vm219, %v207, 0
  %vm223 = vcmask 1045504
  %v225 = vsel %vm223, %v211, 0
  %227 = vmatprep.subr.mxu0 0.0
  %228 = vmatpush1.msra.mxu0 %v208
  %229 = vmatprep.subr.mxu0 0.0
  %230 = vmatpush1.msra.mxu0 %v209
  %231 = vmatprep.subr.mxu0 0.0
  %232 = vmatpush1.msra.mxu0 %v210
  %233 = vmatprep.subr.mxu0 0.0
  %234 = vmatpush1.msra.mxu0 %v225
  %235 = vmatprep.subr.mxu0 0.0
  %236 = vmatpush1.msra.mxu0 0.0
  %237 = vmatprep.subr.mxu0 0.0
  %238 = vmatpush1.msra.mxu0 0.0
  %239 = vmatprep.subr.mxu0 0.0
  %240 = vmatpush1.msra.mxu0 0.0
  %241 = vmatprep.subr.mxu0 0.0
  %242 = vmatpush1.msra.mxu0 0.0
  %243 = vmatprep.subr.mxu0 0.0
  %244 = vmatpush1.msra.mxu0 0.0
  %245 = vmatprep.subr.mxu0 0.0
  %246 = vmatpush1.msra.mxu0 0.0
  %247 = vmatprep.subr.mxu0 0.0
  %248 = vmatpush1.msra.mxu0 0.0
  %249 = vmatprep.subr.mxu0 0.0
  %250 = vmatpush1.msra.mxu0 0.0
  %251 = vmatprep.subr.mxu0 0.0
  %252 = vmatpush1.msra.mxu0 0.0
  %253 = vmatprep.subr.mxu0 0.0
  %254 = vmatpush1.msra.mxu0 0.0
  %255 = vmatprep.subr.mxu0 0.0
  %256 = vmatpush1.msra.mxu0 0.0
  %257 = vmatprep.subr.mxu0 0.0
  %258 = vmatpush1.msra.mxu0 0.0
  %259 = vmatprep.subr.mxu0 0.0
  %260 = vmatpush1.msra.mxu0 0.0
  %261 = vmatprep.subr.mxu0 0.0
  %262 = vmatpush1.msra.mxu0 0.0
  %263 = vmatprep.subr.mxu0 0.0
  %264 = vmatpush1.msra.mxu0 0.0
  %265 = vmatprep.subr.mxu0 0.0
  %266 = vmatpush1.msra.mxu0 0.0
  %267 = vmatprep.subr.mxu0 0.0
  %268 = vmatpush1.msra.mxu0 0.0
  %269 = vmatprep.subr.mxu0 0.0
  %270 = vmatpush1.msra.mxu0 0.0
  %271 = vmatprep.subr.mxu0 0.0
  %272 = vmatpush1.msra.mxu0 0.0
  %273 = vmatprep.subr.mxu0 0.0
  %274 = vmatpush1.msra.mxu0 0.0
  %275 = vmatprep.subr.mxu0 0.0
  %276 = vmatpush1.msra.mxu0 0.0
  %277 = vmatprep.subr.mxu0 0.0
  %278 = vmatpush1.msra.mxu0 0.0
  %279 = vmatprep.subr.mxu0 0.0
  %280 = vmatpush1.msra.mxu0 0.0
  %281 = vmatprep.subr.mxu0 0.0
  %282 = vmatpush1.msra.mxu0 0.0
  %283 = vmatprep.subr.mxu0 0.0
  %284 = vmatpush1.msra.mxu0 0.0
  %285 = vmatprep.subr.mxu0 0.0
  %286 = vmatpush1.msra.mxu0 0.0
  %287 = vmatprep.subr.mxu0 0.0
  %288 = vmatpush1.msra.mxu0 0.0
  %289 = vmatprep.subr.mxu0 0.0
  %290 = vmatpush1.msra.mxu0 0.0
  %291 = vmatprep.mubr.f32.mxu0 0.0
  %292 = vmatmul.mubr.f32.gmra.mrb[0].mxu0 %v221
  %v293 = vpop.f32.mrb[0].mxu0
  %v294 = vadd.f32 %v217, %v293
  %v295 = vpop.f32.mrb[0].mxu0
  %296 = vdwg.mxu0
  %vm297 = vcmask 15360
  %298 = vst.msk [vmem:[%s7] sm:$0xff] %vm297, %v294
  // Predicated region
  $region30: #{tpu_custom_call.1} parent=0 // pred_check
    _
  $region31: #{tpu_custom_call.1} parent=0 // pred_check_branch
    %300 = sbr.rel (0) target = $region33
  $region32: #{tpu_custom_call.1} parent=0 // pred_region
    _
  $region33: #{tpu_custom_call.1} parent=0 // pred_fallthru
    _
  // Predicated region
  $region34: #{tpu_custom_call.1} parent=0 // pred_check
    _
  $region35: #{tpu_custom_call.1} parent=0 // pred_check_branch
    %302 = sbr.rel (0) target = $region37
  $region36: #{tpu_custom_call.1} parent=0 // pred_region
    _
  $region37: #{tpu_custom_call.1} parent=0 // pred_fallthru
    _

</llo_original>
